<compile_context>
chip_gen: v5e
topology: v5e:2x2
jax: 0.10.0
libtpu: 0.0.40
codegen_flags: <defaults>
</compile_context>

<pallas_src>
import jax
import jax.numpy as jnp
from jax.experimental import pallas as pl
from jax.experimental.pallas import tpu as pltpu


def _copy_kernel(x_ref, o_ref):
    # Pure elementwise copy of one lane-dense tile.
    o_ref[...] = x_ref[...]


_LANE = 128
# Per-block byte budget (~2 MiB). Double-buffered input + output => ~4x this
# resident in VMEM, comfortably under the 16 MiB default scoped VMEM on v5e
# and far under v7x's 64 MiB physical VMEM.
_BLOCK_BYTES = 2 * 1024 * 1024


def identity_layer(x: jax.Array) -> jax.Array:
    """Pallas implementation of IndentityLayer.forward(x) -> x."""
    # Degenerate cases: identity semantics with zero work.
    if x.ndim == 0 or x.size == 0:
        return x

    orig_shape = x.shape
    n = x.size
    flat = x.reshape(-1)  # metadata-only for a contiguous array

    # Lane-dense 2-D view: last dim a (large) multiple of 128 so stores are
    # unmasked full-vreg stores.
    lane = None
    for cand in (1024, 512, 256, 128):
        if n % cand == 0:
            lane = cand
            break
    if lane is None:
        # Ragged total size: pad up to a multiple of 128, slice off afterwards.
        lane = _LANE
        pad = (-n) % lane
        flat = jnp.pad(flat, (0, pad))

    rows = flat.size // lane
    x2d = flat.reshape(rows, lane)

    # Byte-budgeted row tile (multiple of 8 sublanes); cdiv grid handles any
    # row count (boundary block is partial, Pallas masks the writeback).
    bytes_per_row = lane * x2d.dtype.itemsize
    tile_rows = max(8, (_BLOCK_BYTES // bytes_per_row) // 8 * 8)
    if tile_rows >= rows:
        tile_rows = rows  # full-extent block is always layout-legal
    grid = (pl.cdiv(rows, tile_rows),)

    out2d = pl.pallas_call(
        _copy_kernel,
        out_shape=jax.ShapeDtypeStruct((rows, lane), x2d.dtype),
        grid=grid,
        in_specs=[pl.BlockSpec((tile_rows, lane), lambda i: (i, 0))],
        out_specs=pl.BlockSpec((tile_rows, lane), lambda i: (i, 0)),
        # Let XLA alias the input buffer to the output instead of
        # materializing a second HBM array.
        input_output_aliases={0: 0},
        compiler_params=pltpu.CompilerParams(
            dimension_semantics=("parallel",),
            vmem_limit_bytes=32 * 1024 * 1024,
        ),
    )(x2d)

    out_flat = out2d.reshape(-1)
    if out_flat.size != n:
        out_flat = out_flat[:n]
    return out_flat.reshape(orig_shape)


if __name__ == "__main__":
    key = jax.random.PRNGKey(0)
    # Small NCHW input consistent with the conv-style module this sits in.
    x = jax.random.normal(key, (2, 4, 16, 16), dtype=jnp.float32)

    fn = jax.jit(identity_layer)
    y = fn(x)
    y = jax.block_until_ready(y)

    assert y.shape == x.shape, (y.shape, x.shape)
    assert y.dtype == x.dtype, (y.dtype, x.dtype)
    assert bool(jnp.array_equal(y, x)), "identity output mismatch"

    print("KERNEL_OK")
</pallas_src>

<mosaic_0001>
module attributes {stable_mosaic.version = 11 : i64} {
  func.func @_copy_kernel(%arg0: i32, %arg1: memref<2x1024xf32, #tpu.memory_space<vmem>>, %arg2: memref<2x1024xf32, #tpu.memory_space<vmem>>) attributes {dimension_semantics = [#tpu.dimension_semantics<parallel>], iteration_bounds = array<i64: 1>, scalar_prefetch = 0 : i64, scratch_operands = 0 : i64, tpu.core_type = #tpu.core_type<tc>, window_params = [{transform_indices = @transform_0, window_bounds = array<i64: 2, 1024>}, {transform_indices = @transform_1, window_bounds = array<i64: 2, 1024>}]} {
    %c0 = arith.constant 0 : index
    %c0_0 = arith.constant 0 : index
    %0 = vector.load %arg1[%c0, %c0_0] : memref<2x1024xf32, #tpu.memory_space<vmem>>, vector<2x1024xf32>
    %c0_1 = arith.constant 0 : index
    %c0_2 = arith.constant 0 : index
    %1 = vector.load %arg2[%c0_1, %c0_2] : memref<2x1024xf32, #tpu.memory_space<vmem>>, vector<2x1024xf32>
    tpu.vector_store %arg2[%c0_1, %c0_2], %0 {strides = array<i32>} : memref<2x1024xf32, #tpu.memory_space<vmem>>, vector<2x1024xf32>,
    return
  }
  func.func @transform_0(%arg0: i32) -> (i32, i32) {
    %c0_i32 = arith.constant 0 : i32
    %c0_i32_0 = arith.constant 0 : i32
    return %arg0, %c0_i32 : i32, i32
  }
  func.func @transform_1(%arg0: i32) -> (i32, i32) {
    %c0_i32 = arith.constant 0 : i32
    %c0_i32_0 = arith.constant 0 : i32
    return %arg0, %c0_i32 : i32, i32
  }
}

</mosaic_0001>

<llo_original>
// kernel: identity_layer.1
$region0: #{identity_layer.1}
  #allocation0 [shape = 'u32[]', space=smem, size = 0x4, offset = 0x4, fixed_abs, tag = 'smem constant byte address 0x4 - core index']
  #allocation1 [shape = 'u32[72,128]{1,0:T(1,128)}', space=vmem, size = 0x9000, scoped, tag = 'internal scratch']
  %s0 = inlined_call_operand.vmem [shape: f32[2,1024], index: 0, kind: input, shape index: {}, may-alias: {0,1}]
  %s1 = inlined_call_operand.vmem [shape: f32[2,1024], index: 1, kind: output, shape index: {}, may-alias: {0,1}]
  %s2 = sld [smem:[#allocation0]]
  $region14: #{identity_layer.1} parent=0
    _
  %s4 = ssub.s32 1, %s2
  %s5 = scalar_select 0, %s4, %s2
  // Predicated region
  $region2: #{identity_layer.1} parent=0 // pred_check
    _
  $region3: #{identity_layer.1} parent=0 // pred_check_branch
    %7 = sbr.rel (0) target = $region5
  $region4: #{identity_layer.1} parent=0 // pred_region
    _
  $region5: #{identity_layer.1} parent=0 // pred_fallthru
    _
  %v8 = vld [vmem:[%s0] sm:$0xff]
  %v9 = vld [vmem:[%s0 + $0x8] sm:$0xff]
  %10 = vst [vmem:[%s1] sm:$0xff] %v8
  %11 = vst [vmem:[%s1 + $0x8] sm:$0xff] %v9
  // Predicated region
  $region6: #{identity_layer.1} parent=0 // pred_check
    _
  $region7: #{identity_layer.1} parent=0 // pred_check_branch
    %13 = sbr.rel (0) target = $region9
  $region8: #{identity_layer.1} parent=0 // pred_region
    _
  $region9: #{identity_layer.1} parent=0 // pred_fallthru
    _
  // Predicated region
  $region10: #{identity_layer.1} parent=0 // pred_check
    _
  $region11: #{identity_layer.1} parent=0 // pred_check_branch
    %15 = sbr.rel (0) target = $region13
  $region12: #{identity_layer.1} parent=0 // pred_region
    _
  $region13: #{identity_layer.1} parent=0 // pred_fallthru
    _

</llo_original>
